<compile_context>
chip_gen: v6e
topology: v6e:2x2x1
jax: 0.10.0
libtpu: 0.0.40
codegen_flags: <defaults>
</compile_context>

<pallas_src>
import math

import jax
import jax.numpy as jnp
from jax.experimental import pallas as pl
from jax.experimental.pallas import tpu as pltpu


# --------------------------------------------------------------------------- #
# Kernel
# --------------------------------------------------------------------------- #
def _affine_kernel(x_ref, w_ref, b_ref, o_ref):
    # (tile_r, tile_d) * (1, tile_d) + (1, tile_d): broadcast over sublanes.
    o_ref[...] = x_ref[...] * w_ref[...] + b_ref[...]


# --------------------------------------------------------------------------- #
# Tiling helpers
# --------------------------------------------------------------------------- #
_LANE = 128
_FAST_PATH_BYTES = 256 * 1024  # below this, plain XLA beats a kernel launch


def _vmem_capacity_bytes() -> int:
    """Per-TC VMEM capacity; conservative fallback (v7x) if the query fails."""
    try:
        info = pltpu.get_tpu_info()
        cap = getattr(info, "vmem_capacity_bytes", None)
        if cap:
            return int(cap)
    except Exception:
        pass
    return 64 * 1024 * 1024


def _sublane_granule(itemsize: int) -> int:
    # f32 -> 8, bf16/f16 -> 16, int8/fp8 -> 32 (native packed tile heights).
    return max(8, 32 // max(1, itemsize))


def _fold_rows_into_lanes(rows: int, d: int) -> int:
    """Smallest k with (k*d) % 128 == 0; fold only when rows divides evenly."""
    if d % _LANE == 0:
        return 1
    k = _LANE // math.gcd(d, _LANE)
    if k > 1 and rows % k == 0 and k * d <= 65536:
        return k
    return 1


def _pick_tiles(rows: int, d: int, itemsize: int, budget_bytes: int):
    """Bytes-driven tiles: rows multiple of the sublane granule, d a multiple
    of 128 (or full extent). Guarantees >= 2 blocks for non-tiny inputs."""
    granule = _sublane_granule(itemsize)

    # Prefer a full-d contiguous slab (single contiguous HBM transfer); only
    # split d when a full-d block cannot keep >= 64 rows under the budget.
    tile_d = d
    if d > _LANE and d % _LANE == 0:
        rows_full = budget_bytes // max(1, d * itemsize)
        if rows_full < 64:
            tile_d = (budget_bytes // (64 * itemsize)) // _LANE * _LANE
            tile_d = max(_LANE, min(tile_d, d))

    # Row tile: biggest multiple of the granule under the byte budget (no
    # artificial row cap -> narrow-d inputs still get large tiles).
    rows_budget = budget_bytes // max(1, tile_d * itemsize)
    rows_budget = max(granule, (rows_budget // granule) * granule)
    tile_r = min(rows, rows_budget)
    if tile_r < rows:
        tile_r = max(granule, (tile_r // granule) * granule)

    # Megacore: make sure v7x's 2 TensorCores both get a block when the input
    # is big enough to be worth splitting.
    if pl.cdiv(rows, tile_r) * pl.cdiv(d, tile_d) < 2 and rows > 2 * granule:
        half = pl.cdiv(rows, 2)
        tile_r = ((half + granule - 1) // granule) * granule

    return tile_r, tile_d


# --------------------------------------------------------------------------- #
# Wrapper
# --------------------------------------------------------------------------- #
def affine_mapping(x: jax.Array, w: jax.Array, b: jax.Array,
                   *, force_pallas: bool = False) -> jax.Array:
    """out = x * w + b, with w/b of shape (input_size,) broadcast on last dim."""
    d = w.shape[-1]
    assert x.shape[-1] == d, f"last dim of x must be {d}, got {x.shape}"

    # Match PyTorch type promotion (e.g. bf16 input * f32 param -> f32).
    out_dtype = jnp.result_type(x.dtype, w.dtype, b.dtype)
    itemsize = jnp.dtype(out_dtype).itemsize

    # Tiny-input fast path: launch overhead dominates, let XLA fuse the FMA.
    if not force_pallas and x.size * itemsize < _FAST_PATH_BYTES:
        return (x.astype(out_dtype) * w.astype(out_dtype)
                + b.astype(out_dtype)).reshape(x.shape)

    orig_shape = x.shape
    x2 = x.reshape(-1, d).astype(out_dtype)
    rows = x2.shape[0]

    # Fold rows into the lane axis when d is not a multiple of 128 so every
    # store is an unmasked, lane-dense vst.
    k = _fold_rows_into_lanes(rows, d)
    d_eff = k * d
    if k > 1:
        x2 = x2.reshape(rows // k, d_eff)
        rows //= k
        w2 = jnp.tile(w.astype(out_dtype), k).reshape(1, d_eff)
        b2 = jnp.tile(b.astype(out_dtype), k).reshape(1, d_eff)
    else:
        w2 = w.astype(out_dtype).reshape(1, d_eff)
        b2 = b.astype(out_dtype).reshape(1, d_eff)

    # Chip-aware per-buffer tile budget: ~4 MiB on v7x (64 MiB VMEM),
    # ~8 MiB on v5e/v6e (128 MiB VMEM).
    vmem_cap = _vmem_capacity_bytes()
    budget = 4 * 1024 * 1024 if vmem_cap <= 64 * 1024 * 1024 else 8 * 1024 * 1024

    tile_r, tile_d = _pick_tiles(rows, d_eff, itemsize, budget)

    # VMEM request from actual need (x + out double-buffered, tiny w/b, slack),
    # capped well below per-TC physical capacity for compile robustness.
    tile_bytes = tile_r * tile_d * itemsize
    vmem_need = 4 * tile_bytes + 4 * tile_d * itemsize + (4 << 20)
    vmem_ceiling = 48 * 1024 * 1024 if vmem_cap <= 64 * 1024 * 1024 else 100 * 1024 * 1024
    vmem_limit = min(max(vmem_need, 16 * 1024 * 1024), vmem_ceiling)

    # Grid: d-blocks outer, row-blocks inner -> w/b block index is constant
    # across the inner loop, so Pallas keeps them resident (no re-DMA).
    grid = (pl.cdiv(d_eff, tile_d), pl.cdiv(rows, tile_r))

    out = pl.pallas_call(
        _affine_kernel,
        out_shape=jax.ShapeDtypeStruct((rows, d_eff), out_dtype),
        grid=grid,
        in_specs=[
            pl.BlockSpec((tile_r, tile_d), lambda j, i: (i, j)),   # x tile
            pl.BlockSpec((1, tile_d), lambda j, i: (0, j)),        # w row
            pl.BlockSpec((1, tile_d), lambda j, i: (0, j)),        # b row
        ],
        out_specs=pl.BlockSpec((tile_r, tile_d), lambda j, i: (i, j)),
        compiler_params=pltpu.CompilerParams(
            dimension_semantics=("parallel", "parallel"),
            vmem_limit_bytes=vmem_limit,
        ),
    )(x2, w2, b2)

    return out.reshape(orig_shape)


# --------------------------------------------------------------------------- #
# Module classes (mirror the PyTorch spec)
# --------------------------------------------------------------------------- #
class MappingStrategy:
    """映射策略基类 (JAX/Pallas port). Base forward is a no-op, as in PyTorch."""

    def __init__(self, input_size: int):
        self.input_size = input_size

    def forward(self, *args, **kwargs):
        # Mirror the PyTorch base class: `pass` -> returns None.
        return None

    def __call__(self, *args, **kwargs):
        return self.forward(*args, **kwargs)


class AffineMapping(MappingStrategy):
    """仿射映射：元素乘法加偏置 (inputs * w + b), executed as a Pallas TPU kernel."""

    def __init__(self, input_size: int, dtype=jnp.float32):
        super().__init__(input_size)
        # Same init as the PyTorch module: w = ones, b = zeros.
        self.w = jnp.ones((input_size,), dtype=dtype)
        self.b = jnp.zeros((input_size,), dtype=dtype)

    def forward(self, inputs: jax.Array) -> jax.Array:
        return affine_mapping(inputs, self.w, self.b)


# --------------------------------------------------------------------------- #
# Self-test
# --------------------------------------------------------------------------- #
if __name__ == "__main__":
    key = jax.random.PRNGKey(0)
    kx, kw, kb, kx2 = jax.random.split(key, 4)

    # Small shapes consistent with the module: (batch, channels, seq, input_size).
    input_size = 32
    x = jax.random.normal(kx, (2, 4, 16, input_size), dtype=jnp.float32)

    # Base class keeps PyTorch's no-op semantics.
    assert MappingStrategy(input_size)(x) is None

    mapping = AffineMapping(input_size)

    # Default params (w=1, b=0) -> identity; force the Pallas path (d=32 is
    # folded 4x into a 128-wide lane axis).
    y0 = jax.block_until_ready(affine_mapping(x, mapping.w, mapping.b, force_pallas=True))
    assert y0.shape == x.shape and y0.dtype == x.dtype
    assert bool(jnp.allclose(y0, x))

    # Non-trivial affine params, Pallas path.
    mapping.w = jax.random.normal(kw, (input_size,), dtype=jnp.float32)
    mapping.b = jax.random.normal(kb, (input_size,), dtype=jnp.float32)
    ref = x * mapping.w + mapping.b
    y = jax.block_until_ready(affine_mapping(x, mapping.w, mapping.b, force_pallas=True))
    assert bool(jnp.allclose(y, ref, atol=1e-6, rtol=1e-6))

    # Module __call__ uses the auto path (tiny input -> XLA fast path).
    y_fast = jax.block_until_ready(mapping(x))
    assert bool(jnp.allclose(y_fast, ref, atol=1e-6, rtol=1e-6))

    # Lane-aligned d=128 with an odd (non-multiple-of-8) row count exercises
    # the full-extent row-block path.
    m128 = AffineMapping(128)
    m128.w = jax.random.normal(kw, (128,), dtype=jnp.float32)
    m128.b = jax.random.normal(kb, (128,), dtype=jnp.float32)
    x_odd = jax.random.normal(kx2, (5, 128), dtype=jnp.float32)
    y_odd = jax.block_until_ready(affine_mapping(x_odd, m128.w, m128.b, force_pallas=True))
    assert bool(jnp.allclose(y_odd, x_odd * m128.w + m128.b, atol=1e-6, rtol=1e-6))

    # bf16 input with f32 params -> f32 compute/output (PyTorch promotion).
    x_bf = x.astype(jnp.bfloat16)
    y_bf = jax.block_until_ready(affine_mapping(x_bf, mapping.w, mapping.b, force_pallas=True))
    assert y_bf.dtype == jnp.float32
    ref_bf = x_bf.astype(jnp.float32) * mapping.w + mapping.b
    assert bool(jnp.allclose(y_bf, ref_bf, atol=1e-2, rtol=1e-2))

    print("KERNEL_OK")
</pallas_src>

<mosaic_0001>
module attributes {stable_mosaic.version = 11 : i64} {
  func.func @_affine_kernel(%arg0: i32, %arg1: i32, %arg2: memref<16x128xf32, #tpu.memory_space<vmem>>, %arg3: memref<1x128xf32, #tpu.memory_space<vmem>>, %arg4: memref<1x128xf32, #tpu.memory_space<vmem>>, %arg5: memref<16x128xf32, #tpu.memory_space<vmem>>) attributes {dimension_semantics = [#tpu.dimension_semantics<parallel>, #tpu.dimension_semantics<parallel>], iteration_bounds = array<i64: 1, 2>, scalar_prefetch = 0 : i64, scratch_operands = 0 : i64, tpu.core_type = #tpu.core_type<tc>, window_params = [{transform_indices = @transform_0, window_bounds = array<i64: 16, 128>}, {transform_indices = @transform_1, window_bounds = array<i64: 1, 128>}, {transform_indices = @transform_2, window_bounds = array<i64: 1, 128>}, {transform_indices = @transform_3, window_bounds = array<i64: 16, 128>}]} {
    %c0 = arith.constant 0 : index
    %c0_0 = arith.constant 0 : index
    %0 = vector.load %arg2[%c0, %c0_0] : memref<16x128xf32, #tpu.memory_space<vmem>>, vector<16x128xf32>
    %c0_1 = arith.constant 0 : index
    %c0_2 = arith.constant 0 : index
    %1 = vector.load %arg3[%c0_1, %c0_2] : memref<1x128xf32, #tpu.memory_space<vmem>>, vector<1x128xf32>
    %2 = vector.broadcast %1 : vector<1x128xf32> to vector<16x128xf32>
    %3 = arith.mulf %0, %2 : vector<16x128xf32>
    %c0_3 = arith.constant 0 : index
    %c0_4 = arith.constant 0 : index
    %4 = vector.load %arg4[%c0_3, %c0_4] : memref<1x128xf32, #tpu.memory_space<vmem>>, vector<1x128xf32>
    %5 = vector.broadcast %4 : vector<1x128xf32> to vector<16x128xf32>
    %6 = arith.addf %3, %5 : vector<16x128xf32>
    %c0_5 = arith.constant 0 : index
    %c0_6 = arith.constant 0 : index
    %7 = vector.load %arg5[%c0_5, %c0_6] : memref<16x128xf32, #tpu.memory_space<vmem>>, vector<16x128xf32>
    tpu.vector_store %arg5[%c0_5, %c0_6], %6 {strides = array<i32>} : memref<16x128xf32, #tpu.memory_space<vmem>>, vector<16x128xf32>,
    return
  }
  func.func @transform_0(%arg0: i32, %arg1: i32) -> (i32, i32) {
    %c0_i32 = arith.constant 0 : i32
    return %arg1, %arg0 : i32, i32
  }
  func.func @transform_1(%arg0: i32, %arg1: i32) -> (i32, i32) {
    %c0_i32 = arith.constant 0 : i32
    %c0_i32_0 = arith.constant 0 : i32
    return %c0_i32, %arg0 : i32, i32
  }
  func.func @transform_2(%arg0: i32, %arg1: i32) -> (i32, i32) {
    %c0_i32 = arith.constant 0 : i32
    %c0_i32_0 = arith.constant 0 : i32
    return %c0_i32, %arg0 : i32, i32
  }
  func.func @transform_3(%arg0: i32, %arg1: i32) -> (i32, i32) {
    %c0_i32 = arith.constant 0 : i32
    return %arg1, %arg0 : i32, i32
  }
}

</mosaic_0001>

<llo_original>
// kernel: tpu_custom_call.1
$region0: #{tpu_custom_call.1}
  #allocation0 [shape = 'u32[]', space=smem, size = 0x4, offset = 0x4, fixed_abs, tag = 'smem constant byte address 0x4 - core index']
  #allocation1 [shape = 'u32[144,128]{1,0:T(1,128)}', space=vmem, size = 0x12000, scoped, tag = 'internal scratch']
  %s0 = inlined_call_operand.hbm [shape: f32[32,128], index: 0, kind: input, shape index: {}]
  %s1 = inlined_call_operand.vmem [shape: f32[1,128], index: 1, kind: input, shape index: {}]
  %s2 = inlined_call_operand.vmem [shape: f32[1,128], index: 2, kind: input, shape index: {}]
  %s3 = inlined_call_operand.hbm [shape: f32[32,128], index: 3, kind: output, shape index: {}]
  %s4 = sld [smem:[#allocation0]]
  $region49: #{tpu_custom_call.1} parent=0
    _
  %s6 = ssub.s32 1, %s4
  %s7 = scalar_select 0, %s6, %s4
  $region1: #{tpu_custom_call.1} parent=0
    #allocation2 [shape = 'u8[16384]{0}', space=vmem, size = 0x4000, scoped, tag = 'input window, operand 0']
    #allocation3 [shape = 's32[2]{0}', space=sflag, size = 0x8, scoped, tag = 'scoped memory for tpu_custom_call.1']
    #allocation4 [shape = 's32[2]{0}', space=sflag, size = 0x8, scoped, tag = 'scoped memory for tpu_custom_call.1']
    #allocation5 [shape = 'u8[16384]{0}', space=vmem, size = 0x4000, scoped, tag = 'output window, operand 0']
    %8 = vsyncpa [#allocation3], 0
    %s9 = scalar_lea.sflag [#allocation3], 1
    %10 = vsyncpa %s9, 0
    %11 = vsyncpa [#allocation4], 0
    %s12 = scalar_lea.sflag [#allocation4], 1
    %13 = vsyncpa %s12, 0
    loop: start=0, step=1, limit=4
    $region2: #{tpu_custom_call.1} parent=1 // loop_pre_header
      _
    $region3: #{tpu_custom_call.1} parent=1 // loop_header
      %s15 = sphi 0, %s19
      %p16 = scmp.ge.s32.totalorder %s15, 4
      %s22 = sphi 0, %s34
      %s23 = sphi 0, %s30
      %s24 = sphi 0, %s22
      %s25 = sphi 0, %s23
      %s26 = sphi 0, %s24
      %s27 = sphi 0, %s25
      %s39 = sphi 0, %s41
      %s42 = sphi 0, %s39
      %s43 = sphi 0, %s42
      %s59 = sphi 0, %s43
      %s65 = sphi 0, %s67
      %s68 = sphi 0, %s65
      %s69 = sphi 0, %s68
      %s85 = sphi 0, %s69
      %s91 = sphi 0, %s93
      %s94 = sphi 0, %s91
      %s95 = sphi 0, %s94
      %s111 = sphi 0, %s95
      %s119 = sphi 0, %s121
      %s122 = sphi 0, %s119
      %s123 = sphi 0, %s122
      %s139 = sphi 0, %s123
    $region4: #{tpu_custom_call.1} parent=1 // loop_header_branch
      %18 = sbr.rel (%p16) target = $region8
    $region5: #{tpu_custom_call.1} parent=1 // loop_body
      %s20 = ssub.s32 %s15, 1
      %s21 = ssub.s32 %s15, 2
      %s28 = sadd.s32 1, %s23
      %p29 = scmp.ge.s32.totalorder %s28, 2
      %s30 = scalar_select %p29, 0, %s28
      %s31 = sadd.s32 1, %s22
      %s32 = scalar_select %p29, %s31, %s22
      %p33 = scmp.ge.s32.totalorder %s32, 1
      %s34 = scalar_select %p33, 0, %s32
      %s35 = ssub.s32 %s23, %s30
      %s36 = ssub.s32 %s22, %s34
      %s37 = sor.u32 %s35, %s36
      %p38 = scmp.eq.s32.totalorder %s37, 0
      %s40 = sadd.s32 %s39, 1
      %s41 = scalar_select %p38, %s39, %s40
      %p44 = pneg %p38
      %p45 = scmp.eq.s32.totalorder %s15, 1
      %p46 = por %p44, %p45
      %p47 = scmp.ne.s32.totalorder %s39, %s42
      %p48 = scmp.eq.s32.totalorder %s15, 0
      %p49 = por %p47, %p48
      %p50 = scmp.ne.s32.totalorder %s39, %s42
      %p51 = scmp.eq.s32.totalorder %s20, 1
      %p52 = por %p50, %p51
      %p53 = scmp.ne.s32.totalorder %s42, %s43
      %p54 = scmp.eq.s32.totalorder %s20, 0
      %p55 = por %p53, %p54
      %p56 = scmp.ne.s32.totalorder %s42, %s43
      %p57 = scmp.eq.s32.totalorder %s21, 1
      %p58 = por %p56, %p57
      %p60 = scmp.ne.s32.totalorder %s43, %s59
      %p61 = scmp.eq.s32.totalorder %s21, 0
      %p62 = por %p60, %p61
      %s63 = ssub.s32 %s22, %s34
      %p64 = scmp.eq.s32.totalorder %s63, 0
      %s66 = sadd.s32 %s65, 1
      %s67 = scalar_select %p64, %s65, %s66
      %p70 = pneg %p64
      %p71 = scmp.eq.s32.totalorder %s15, 1
      %p72 = por %p70, %p71
      %p73 = scmp.ne.s32.totalorder %s65, %s68
      %p74 = scmp.eq.s32.totalorder %s15, 0
      %p75 = por %p73, %p74
      %p76 = scmp.ne.s32.totalorder %s65, %s68
      %p77 = scmp.eq.s32.totalorder %s20, 1
      %p78 = por %p76, %p77
      %p79 = scmp.ne.s32.totalorder %s68, %s69
      %p80 = scmp.eq.s32.totalorder %s20, 0
      %p81 = por %p79, %p80
      %p82 = scmp.ne.s32.totalorder %s68, %s69
      %p83 = scmp.eq.s32.totalorder %s21, 1
      %p84 = por %p82, %p83
      %p86 = scmp.ne.s32.totalorder %s69, %s85
      %p87 = scmp.eq.s32.totalorder %s21, 0
      %p88 = por %p86, %p87
      %s89 = ssub.s32 %s22, %s34
      %p90 = scmp.eq.s32.totalorder %s89, 0
      %s92 = sadd.s32 %s91, 1
      %s93 = scalar_select %p90, %s91, %s92
      %p96 = pneg %p90
      %p97 = scmp.eq.s32.totalorder %s15, 1
      %p98 = por %p96, %p97
      %p99 = scmp.ne.s32.totalorder %s91, %s94
      %p100 = scmp.eq.s32.totalorder %s15, 0
      %p101 = por %p99, %p100
      %p102 = scmp.ne.s32.totalorder %s91, %s94
      %p103 = scmp.eq.s32.totalorder %s20, 1
      %p104 = por %p102, %p103
      %p105 = scmp.ne.s32.totalorder %s94, %s95
      %p106 = scmp.eq.s32.totalorder %s20, 0
      %p107 = por %p105, %p106
      %p108 = scmp.ne.s32.totalorder %s94, %s95
      %p109 = scmp.eq.s32.totalorder %s21, 1
      %p110 = por %p108, %p109
      %p112 = scmp.ne.s32.totalorder %s95, %s111
      %p113 = scmp.eq.s32.totalorder %s21, 0
      %p114 = por %p112, %p113
      %s115 = ssub.s32 %s23, %s30
      %s116 = ssub.s32 %s22, %s34
      %s117 = sor.u32 %s115, %s116
      %p118 = scmp.eq.s32.totalorder %s117, 0
      %s120 = sadd.s32 %s119, 1
      %s121 = scalar_select %p118, %s119, %s120
      %p124 = pneg %p118
      %p125 = scmp.eq.s32.totalorder %s15, 1
      %p126 = por %p124, %p125
      %p127 = scmp.ne.s32.totalorder %s119, %s122
      %p128 = scmp.eq.s32.totalorder %s15, 0
      %p129 = por %p127, %p128
      %p130 = scmp.ne.s32.totalorder %s119, %s122
      %p131 = scmp.eq.s32.totalorder %s20, 1
      %p132 = por %p130, %p131
      %p133 = scmp.ne.s32.totalorder %s122, %s123
      %p134 = scmp.eq.s32.totalorder %s20, 0
      %p135 = por %p133, %p134
      %p136 = scmp.ne.s32.totalorder %s122, %s123
      %p137 = scmp.eq.s32.totalorder %s21, 1
      %p138 = por %p136, %p137
      %p140 = scmp.ne.s32.totalorder %s123, %s139
      %p141 = scmp.eq.s32.totalorder %s21, 0
      %p142 = por %p140, %p141
      %p143 = scmp.le.s32.totalorder 1, %s15
      %p144 = scmp.lt.s32.totalorder %s15, 3
      %p145 = pnand %p143, %p144
      %p146 = pneg %p145
      // Predicated region
      $region9: #{tpu_custom_call.1} parent=5 // pred_check
        _
      $region10: #{tpu_custom_call.1} parent=5 // pred_check_branch
        %148 = sbr.rel (%p145) target = $region12
      $region11: #{tpu_custom_call.1} parent=5 // pred_region
        %s149 = ssub.s32 %s15, 1
        // Predicated region
        $region13: #{tpu_custom_call.1} parent=11 // pred_check
          %p150 = pneg %p81
        $region14: #{tpu_custom_call.1} parent=11 // pred_check_branch
          %152 = sbr.rel (%p150) target = $region16
        $region15: #{tpu_custom_call.1} parent=11 // pred_region
          %p153 = scmp.lt.s32.totalorder %s24, 0
          %s154 = scalar_select %p153, %s24, 0
          %s155 = scalar_lea.vmem %s1, %s154
        $region16: #{tpu_custom_call.1} parent=11 // pred_fallthru
          _
        // Predicated region
        $region17: #{tpu_custom_call.1} parent=11 // pred_check
          %p156 = pneg %p107
        $region18: #{tpu_custom_call.1} parent=11 // pred_check_branch
          %158 = sbr.rel (%p156) target = $region20
        $region19: #{tpu_custom_call.1} parent=11 // pred_region
          %p159 = scmp.lt.s32.totalorder %s24, 0
          %s160 = scalar_select %p159, %s24, 0
          %s161 = scalar_lea.vmem %s2, %s160
        $region20: #{tpu_custom_call.1} parent=11 // pred_fallthru
          _
      $region12: #{tpu_custom_call.1} parent=5 // pred_fallthru
        _
      %p162 = scmp.lt.s32.totalorder %s15, 2
      // Predicated region
      $region21: #{tpu_custom_call.1} parent=5 // pred_check
        %p163 = pneg %p162
      $region22: #{tpu_custom_call.1} parent=5 // pred_check_branch
        %165 = sbr.rel (%p163) target = $region24
      $region23: #{tpu_custom_call.1} parent=5 // pred_region
        // Predicated region
        $region25: #{tpu_custom_call.1} parent=23 // pred_check
          %p166 = pneg %p49
        $region26: #{tpu_custom_call.1} parent=23 // pred_check_branch
          %168 = sbr.rel (%p166) target = $region28
        $region27: #{tpu_custom_call.1} parent=23 // pred_region
          %s169 = sand.u32 %s39, 1
          %s170 = scalar_lea.sflag [#allocation3], %s169
          %s171 = sand.u32 %s39, 1
          %s172 = smul.addr %s171, 16
          %s173 = scalar_lea.vmem [#allocation2], %s172
          %s174 = smul.u32 2, %s23
          %s176 = ssub.s32 256, 256
          %177 = vsyncadd %s170, %s176
          %s178 = sadd.s32 %s22, %s174
          %s179 = smul.addr %s178, 128
          %s180 = scalar_lea.hbm %s0, %s179
          %s181 = sshll.u32 %s173, 4
          %s182 = int_to_ptr.vmem [resolvable:$true] %s181
          %187 = dma.hbm_to_vmem [thread:$0]  %s180, 256, %s182, %s170, 128, 128, 8
        $region28: #{tpu_custom_call.1} parent=23 // pred_fallthru
          _
      $region24: #{tpu_custom_call.1} parent=5 // pred_fallthru
        _
      %p188 = scmp.le.s32.totalorder 1, %s15
      %p189 = scmp.lt.s32.totalorder %s15, 3
      %p190 = pnand %p188, %p189
      %p191 = pneg %p190
      // Predicated region
      $region29: #{tpu_custom_call.1} parent=5 // pred_check
        _
      $region30: #{tpu_custom_call.1} parent=5 // pred_check_branch
        %193 = sbr.rel (%p190) target = $region32
      $region31: #{tpu_custom_call.1} parent=5 // pred_region
        %s194 = ssub.s32 %s15, 1
        %s195 = sand.u32 %s42, 1
        %s196 = scalar_lea.sflag [#allocation3], %s195
        %s197 = sand.u32 %s42, 1
        %s198 = smul.addr %s197, 16
        %s199 = scalar_lea.vmem [#allocation2], %s198
        // Predicated region
        $region33: #{tpu_custom_call.1} parent=31 // pred_check
          %p200 = pneg %p55
        $region34: #{tpu_custom_call.1} parent=31 // pred_check_branch
          %202 = sbr.rel (%p200) target = $region36
        $region35: #{tpu_custom_call.1} parent=31 // pred_region
          %203 = dma.done %s196, 256
        $region36: #{tpu_custom_call.1} parent=31 // pred_fallthru
          _
        %s204 = sand.u32 %s42, 1
        %s205 = scalar_lea.sflag [#allocation3], %s204
        %s206 = sand.u32 %s42, 1
        %s207 = smul.addr %s206, 16
        %s208 = scalar_lea.vmem [#allocation2], %s207
        %p209 = pneg %p55
        %p210 = pneg %p52
        %p211 = scmp.lt.s32.totalorder %s24, 0
        %s212 = scalar_select %p211, %s24, 0
        %s213 = scalar_lea.vmem %s1, %s212
        %p214 = pneg %p81
        %p215 = pneg %p78
        %p216 = scmp.lt.s32.totalorder %s24, 0
        %s217 = scalar_select %p216, %s24, 0
        %s218 = scalar_lea.vmem %s2, %s217
        %p219 = pneg %p107
        %p220 = pneg %p104
        %p221 = pneg %p135
        %p222 = pneg %p132
        %s223 = sand.u32 %s122, 1
        %s224 = scalar_lea.sflag [#allocation4], %s223
        %s225 = sand.u32 %s122, 1
        %s226 = smul.addr %s225, 16
        %s227 = scalar_lea.vmem [#allocation5], %s226
        %s228 = smul.u32 2, %s25
        %p229 = scmp.lt.s32.totalorder %s24, 0
        %s230 = scalar_select %p229, %s24, 0
        %s231 = scalar_lea.vmem %s1, %s230
        %p232 = scmp.lt.s32.totalorder %s24, 0
        %s233 = scalar_select %p232, %s24, 0
        %s234 = scalar_lea.vmem %s2, %s233
        %s235 = smul.u32 2, %s25
        %v236 = vld [vmem:[%s199] sm:$0xff]
        %v237 = vld [vmem:[%s199 + $0x8] sm:$0xff]
        %v238 = vld [vmem:[%s231] sm:$0x1]
        %v240 = vlaneseq
        %v241 = vshrl.u32 %v240, 7
        %v242 = vsub.s32 0, %v241
        %v243 = vrot.slane %v238, %v242
        %v245 = vmul.f32 %v236, %v243
        %v246 = vmul.f32 %v237, %v243
        %v247 = vld [vmem:[%s234] sm:$0x1]
        %v249 = vlaneseq
        %v250 = vshrl.u32 %v249, 7
        %v251 = vsub.s32 0, %v250
        %v252 = vrot.slane %v247, %v251
        %v254 = vadd.f32 %v245, %v252
        %v255 = vadd.f32 %v246, %v252
        %256 = vst [vmem:[%s227] sm:$0xff] %v254
        %257 = vst [vmem:[%s227 + $0x8] sm:$0xff] %v255
        %s258 = sand.u32 %s122, 1
        %s259 = scalar_lea.sflag [#allocation4], %s258
        %s260 = sand.u32 %s122, 1
        %s261 = smul.addr %s260, 16
        %s262 = scalar_lea.vmem [#allocation5], %s261
        // Predicated region
        $region37: #{tpu_custom_call.1} parent=31 // pred_check
          %p263 = pneg %p132
        $region38: #{tpu_custom_call.1} parent=31 // pred_check_branch
          %265 = sbr.rel (%p263) target = $region40
        $region39: #{tpu_custom_call.1} parent=31 // pred_region
          %s266 = smul.u32 2, %s25
          %s268 = ssub.s32 256, 256
          %269 = vsyncadd %s259, %s268
          %s270 = sadd.s32 %s24, %s266
          %s271 = smul.addr %s270, 128
          %s272 = scalar_lea.hbm %s3, %s271
          %s273 = sshll.u32 %s262, 4
          %s274 = int_to_ptr.vmem [resolvable:$true] %s273
          %279 = dma.vmem_to_hbm [thread:$0]  %s274, 256, %s272, %s259, 128, 128, 8
        $region40: #{tpu_custom_call.1} parent=31 // pred_fallthru
          _
      $region32: #{tpu_custom_call.1} parent=5 // pred_fallthru
        _
      %p280 = scmp.le.s32.totalorder 2, %s15
      // Predicated region
      $region41: #{tpu_custom_call.1} parent=5 // pred_check
        %p281 = pneg %p280
      $region42: #{tpu_custom_call.1} parent=5 // pred_check_branch
        %283 = sbr.rel (%p281) target = $region44
      $region43: #{tpu_custom_call.1} parent=5 // pred_region
        %s284 = ssub.s32 %s15, 2
        // Predicated region
        $region45: #{tpu_custom_call.1} parent=43 // pred_check
          %p285 = pneg %p138
        $region46: #{tpu_custom_call.1} parent=43 // pred_check_branch
          %287 = sbr.rel (%p285) target = $region48
        $region47: #{tpu_custom_call.1} parent=43 // pred_region
          %s288 = sand.u32 %s123, 1
          %s289 = scalar_lea.sflag [#allocation4], %s288
          %s290 = sand.u32 %s123, 1
          %s291 = smul.addr %s290, 16
          %s292 = scalar_lea.vmem [#allocation5], %s291
          %293 = dma.done %s289, 256
        $region48: #{tpu_custom_call.1} parent=43 // pred_fallthru
          _
      $region44: #{tpu_custom_call.1} parent=5 // pred_fallthru
        _
    $region6: #{tpu_custom_call.1} parent=1 // loop_footer
      %s19 = sadd.s32 1, %s15
    $region7: #{tpu_custom_call.1} parent=1 // loop_footer_branch
      %14 = sbr.rel target = $region3
    $region8: #{tpu_custom_call.1} parent=1 // loop_exit
      _
    %294 = vsyncpa [#allocation3], 1
    %s295 = scalar_lea.sflag [#allocation3], 1
    %296 = vsyncpa %s295, 1
    %297 = vsyncpa [#allocation4], 1
    %s298 = scalar_lea.sflag [#allocation4], 1
    %299 = vsyncpa %s298, 1

</llo_original>
